<compile_context>
chip_gen: v7x
topology: tpu7x:2x2x1
jax: 0.10.0
libtpu: 0.0.40
codegen_flags: <defaults>
</compile_context>

<pallas_src>
import functools

import jax
import jax.numpy as jnp
from jax.experimental import pallas as pl
from jax.experimental.pallas import tpu as pltpu


def _sublane_align(dtype) -> int:
    # Minimum sublane tiling: 8 rows for 32-bit, 16 for 16-bit, 32 for 8-bit.
    itemsize = jnp.dtype(dtype).itemsize
    if itemsize >= 4:
        return 8
    if itemsize == 2:
        return 16
    return 32


def _device_tuning():
    """(target_tile_bytes, vmem_limit_bytes) tuned per TPU generation."""
    kind = ""
    try:
        kind = jax.devices()[0].device_kind.lower()
    except Exception:  # defensive: fall back to conservative defaults
        pass
    if "v7" in kind:
        # v7x: ~3.2 TB/s HBM, 64 MiB/TC VMEM. 4 live buffers * 6 MiB ~= 24 MiB.
        return 6 * 1024 * 1024, 48 * 1024 * 1024
    # v5e / v6e: 4 MiB tiles already sit at the ~85-86% HBM-roofline plateau.
    return 4 * 1024 * 1024, 32 * 1024 * 1024


def _pick_lane_tile(lanes, max_lanes_per_tile):
    """Lane (H*W) tile: full axis when it fits, else a multiple of 128."""
    if lanes <= 128 or lanes <= max_lanes_per_tile:
        return lanes
    lt = max(128, (max_lanes_per_tile // 128) * 128)
    # Prefer a lane tile that divides H*W (no ragged lane tail), but never lose
    # more than 2x tile size hunting for a divisor.
    cand = lt
    while cand >= max(128, lt // 2):
        if lanes % cand == 0:
            return cand
        cand -= 128
    return lt


def _pick_row_tile(rows, row_align, max_rows_per_tile):
    """Row (B*C) tile: full axis when it fits, else a multiple of row_align."""
    if max_rows_per_tile >= rows:
        return rows
    rpt = max(row_align, (max_rows_per_tile // row_align) * row_align)
    # Prefer a row tile that divides B*C (no ragged row tail), within 2x.
    cand = rpt
    while cand >= max(row_align, rpt // 2):
        if rows % cand == 0:
            return cand
        cand -= row_align
    return rpt


def _throm_kernel(x_ref, thr_ref, o_ref, *, rows_per_tile, row_align, out_dtype):
    # x_ref:   (rows_per_tile, lanes_per_tile)  streaming activation tile
    # thr_ref: (rows_padded, 1)                 whole threshold column, VMEM-resident
    # o_ref:   (rows_per_tile, lanes_per_tile)
    r0 = pl.program_id(0) * rows_per_tile
    if rows_per_tile % row_align == 0:
        r0 = pl.multiple_of(r0, row_align)
    t = thr_ref[pl.ds(r0, rows_per_tile), :]          # (rows_per_tile, 1)
    x = x_ref[...].astype(out_dtype)
    o_ref[...] = jnp.maximum(x - t, jnp.zeros((), out_dtype))


def throm_forward(m, thro, *, target_tile_bytes=None, vmem_limit_bytes=None):
    """relu(m - thro) with PyTorch-style broadcasting and type promotion.

    m:    (B, C, H, W)
    thro: (1, C, 1, 1)
    """
    B, C, H, W = m.shape
    assert thro.shape == (1, C, 1, 1)

    dflt_tile, dflt_vmem = _device_tuning()
    if target_tile_bytes is None:
        target_tile_bytes = dflt_tile
    if vmem_limit_bytes is None:
        vmem_limit_bytes = dflt_vmem

    # Match PyTorch promotion: (M - Thro) is computed/returned in the promoted
    # dtype (e.g. bf16 activations with an fp32 parameter -> fp32 output).
    out_dtype = jnp.promote_types(m.dtype, thro.dtype)

    rows = B * C
    lanes = H * W
    in_itemsize = jnp.dtype(m.dtype).itemsize
    out_itemsize = jnp.dtype(out_dtype).itemsize
    max_itemsize = max(in_itemsize, out_itemsize)
    row_align = max(_sublane_align(m.dtype), _sublane_align(out_dtype))

    # ---- Tile selection ----------------------------------------------------
    # Lane axis only tiled when even `row_align` full rows would blow the tile
    # budget; lane tiles are multiples of 128.
    max_lanes_per_tile = max(128, target_tile_bytes // (row_align * max_itemsize))
    lanes_per_tile = _pick_lane_tile(lanes, max_lanes_per_tile)

    # Row axis: as many aligned rows as fit in the budget.
    max_rows_per_tile = max(
        row_align, target_tile_bytes // max(1, lanes_per_tile * max_itemsize)
    )
    rows_per_tile = _pick_row_tile(rows, row_align, max_rows_per_tile)

    grid_rows = pl.cdiv(rows, rows_per_tile)
    grid_lanes = pl.cdiv(lanes, lanes_per_tile)

    # v7x has 2 TensorCores sharding the parallel grid axes: make sure arrays
    # bigger than ~1 MiB get at least 2 grid steps (no effect on v5e/v6e).
    total_bytes = rows * lanes * max_itemsize
    if (grid_rows * grid_lanes == 1 and rows >= 2 * row_align
            and total_bytes > (1 << 20)):
        rows_per_tile = max(row_align, ((rows // 2) // row_align) * row_align)
        grid_rows = pl.cdiv(rows, rows_per_tile)

    # ---- Operands ------------------------------------------------------------
    # Free, contiguous view: lane-dense (B*C, H*W) slab.
    x2d = m.reshape(rows, lanes)

    # One threshold per (b, c) row, kept fully resident in VMEM (constant
    # index_map) and sliced in-kernel; padded so the last tile's slice is
    # always in-bounds.
    rows_padded = grid_rows * rows_per_tile
    thr_rows = jnp.broadcast_to(
        thro.reshape(1, C).astype(out_dtype), (B, C)
    ).reshape(rows, 1)
    if rows_padded != rows:
        thr_rows = jnp.pad(thr_rows, ((0, rows_padded - rows), (0, 0)))

    kernel = functools.partial(
        _throm_kernel,
        rows_per_tile=rows_per_tile,
        row_align=row_align,
        out_dtype=out_dtype,
    )

    cost = pl.CostEstimate(
        flops=2 * rows * lanes,
        transcendentals=0,
        bytes_accessed=rows * lanes * (in_itemsize + out_itemsize)
        + rows * out_itemsize,
    )

    out2d = pl.pallas_call(
        kernel,
        out_shape=jax.ShapeDtypeStruct((rows, lanes), out_dtype),
        grid_spec=pltpu.PrefetchScalarGridSpec(
            num_scalar_prefetch=0,
            grid=(grid_rows, grid_lanes),
            in_specs=[
                pl.BlockSpec((rows_per_tile, lanes_per_tile), lambda r, l: (r, l)),
                pl.BlockSpec((rows_padded, 1), lambda r, l: (0, 0)),
            ],
            out_specs=pl.BlockSpec((rows_per_tile, lanes_per_tile), lambda r, l: (r, l)),
        ),
        compiler_params=pltpu.CompilerParams(
            dimension_semantics=("parallel", "parallel"),
            vmem_limit_bytes=vmem_limit_bytes,
        ),
        cost_estimate=cost,
    )(x2d, thr_rows)

    return out2d.reshape(B, C, H, W)


if __name__ == "__main__":
    key = jax.random.PRNGKey(0)

    # Small shapes consistent with the module: num_M channels, NCHW input.
    B, num_M, H, W = 2, 4, 16, 16

    m = jax.random.normal(key, (B, num_M, H, W), dtype=jnp.float32)

    # Deterministic parameter init exactly as in __init__: full 0.5.
    thro = jnp.full((1, num_M, 1, 1), 0.5, dtype=jnp.float32)

    out = throm_forward(m, thro)
    out = jax.block_until_ready(out)

    # Reference check (plain JAX) to confirm semantics.
    ref = jnp.maximum(m - thro, 0.0)
    assert out.shape == (B, num_M, H, W)
    assert out.dtype == ref.dtype
    assert jnp.allclose(out, ref, atol=1e-6), "mismatch vs reference (fp32)"

    # Mixed-precision check: bf16 activations + fp32 parameter -> fp32 output,
    # matching PyTorch type promotion.
    m_bf16 = m.astype(jnp.bfloat16)
    out_mixed = jax.block_until_ready(throm_forward(m_bf16, thro))
    ref_mixed = jnp.maximum(m_bf16.astype(jnp.float32) - thro, 0.0)
    assert out_mixed.dtype == jnp.float32
    assert jnp.allclose(out_mixed, ref_mixed, atol=1e-6), "mismatch vs reference (bf16)"

    print("KERNEL_OK")
</pallas_src>

<mosaic_0001>
module attributes {stable_mosaic.version = 11 : i64} {
  func.func @_throm_kernel(%arg0: i32, %arg1: i32, %arg2: memref<8x256xf32, #tpu.memory_space<vmem>>, %arg3: memref<8x1xf32, #tpu.memory_space<vmem>>, %arg4: memref<8x256xf32, #tpu.memory_space<vmem>>) attributes {dimension_semantics = [#tpu.dimension_semantics<parallel>, #tpu.dimension_semantics<parallel>], iteration_bounds = array<i64: 1, 1>, scalar_prefetch = 0 : i64, scratch_operands = 0 : i64, tpu.core_type = #tpu.core_type<tc>, window_params = [{transform_indices = @transform_0, window_bounds = array<i64: 8, 256>}, {pipeline_mode = #tpu.pipeline_mode<synchronous>, transform_indices = @transform_1, window_bounds = array<i64: 8, 1>}, {transform_indices = @transform_2, window_bounds = array<i64: 8, 256>}]} {
    %c8_i32 = arith.constant 8 : i32
    %0 = arith.muli %arg0, %c8_i32 : i32
    %1 = tpu.assume_multiple %0, 8 : i32
    %2 = arith.index_cast %1 : i32 to index
    %c0 = arith.constant 0 : index
    %3 = vector.load %arg3[%2, %c0] : memref<8x1xf32, #tpu.memory_space<vmem>>, vector<8x1xf32>
    %c0_0 = arith.constant 0 : index
    %c0_1 = arith.constant 0 : index
    %4 = vector.load %arg2[%c0_0, %c0_1] : memref<8x256xf32, #tpu.memory_space<vmem>>, vector<8x256xf32>
    %5 = vector.broadcast %3 : vector<8x1xf32> to vector<8x256xf32>
    %6 = arith.subf %4, %5 : vector<8x256xf32>
    %cst = arith.constant 0.000000e+00 : f32
    %7 = vector.broadcast %cst : f32 to vector<8x256xf32>
    %8 = arith.maximumf %6, %7 : vector<8x256xf32>
    %c0_2 = arith.constant 0 : index
    %c0_3 = arith.constant 0 : index
    %9 = vector.load %arg4[%c0_2, %c0_3] : memref<8x256xf32, #tpu.memory_space<vmem>>, vector<8x256xf32>
    tpu.vector_store %arg4[%c0_2, %c0_3], %8 {strides = array<i32>} : memref<8x256xf32, #tpu.memory_space<vmem>>, vector<8x256xf32>,
    return
  }
  func.func @transform_0(%arg0: i32, %arg1: i32) -> (i32, i32) {
    %c0_i32 = arith.constant 0 : i32
    return %arg0, %arg1 : i32, i32
  }
  func.func @transform_1(%arg0: i32, %arg1: i32) -> (i32, i32) {
    %c0_i32 = arith.constant 0 : i32
    %c0_i32_0 = arith.constant 0 : i32
    %c0_i32_1 = arith.constant 0 : i32
    return %c0_i32, %c0_i32_0 : i32, i32
  }
  func.func @transform_2(%arg0: i32, %arg1: i32) -> (i32, i32) {
    %c0_i32 = arith.constant 0 : i32
    return %arg0, %arg1 : i32, i32
  }
}

</mosaic_0001>

<llo_original>
// kernel: tpu_custom_call.1
$region0: #{tpu_custom_call.1}
  #allocation0 [shape = 'u32[]', space=smem, size = 0x4, offset = 0x4, fixed_abs, tag = 'smem constant byte address 0x4 - core index']
  #allocation1 [shape = 'u32[144,128]{1,0:T(1,128)}', space=vmem, size = 0x12000, scoped, tag = 'internal scratch']
  %s0 = inlined_call_operand.hbm [shape: f32[8,256], index: 0, kind: input, shape index: {}]
  %s1 = inlined_call_operand.vmem [shape: f32[8,1], index: 1, kind: input, shape index: {}]
  %s2 = inlined_call_operand.hbm [shape: f32[8,256], index: 2, kind: output, shape index: {}]
  %s3 = sld [smem:[#allocation0]]
  $region22: #{tpu_custom_call.1} parent=0
    _
  %s5 = ssub.s32 1, %s3
  %s6 = scalar_select 0, %s5, %s3
  $region1: #{tpu_custom_call.1} parent=0
    #allocation2 [shape = 'u8[8192]{0}', space=vmem, size = 0x2000, scoped, tag = 'input window, operand 0, single buffered']
    #allocation3 [shape = 's32[1]{0}', space=sflag, size = 0x4, scoped, tag = 'scoped memory for tpu_custom_call.1']
    #allocation4 [shape = 's32[1]{0}', space=sflag, size = 0x4, scoped, tag = 'scoped memory for tpu_custom_call.1']
    #allocation5 [shape = 'u8[8192]{0}', space=vmem, size = 0x2000, scoped, tag = 'output window, operand 0, single buffered']
    %7 = vsyncpa [#allocation3], 0
    %8 = vsyncpa [#allocation4], 0
    // Predicated region
    $region2: #{tpu_custom_call.1} parent=1 // pred_check
      _
    $region3: #{tpu_custom_call.1} parent=1 // pred_check_branch
      %10 = sbr.rel (0) target = $region5
    $region4: #{tpu_custom_call.1} parent=1 // pred_region
      %s12 = ssub.s32 256, 256
      %13 = vsyncadd [#allocation3], %s12
      %s15 = sshll.u32 [#allocation2], 4
      %s16 = int_to_ptr.vmem [resolvable:$true] %s15
      %18 = dma.hbm_to_vmem [thread:$0]  %s0, 256, %s16, [#allocation3]
    $region5: #{tpu_custom_call.1} parent=1 // pred_fallthru
      _
    // Predicated region
    $region6: #{tpu_custom_call.1} parent=1 // pred_check
      _
    $region7: #{tpu_custom_call.1} parent=1 // pred_check_branch
      %20 = sbr.rel (0) target = $region9
    $region8: #{tpu_custom_call.1} parent=1 // pred_region
      _
    $region9: #{tpu_custom_call.1} parent=1 // pred_fallthru
      _
    // Predicated region
    $region10: #{tpu_custom_call.1} parent=1 // pred_check
      _
    $region11: #{tpu_custom_call.1} parent=1 // pred_check_branch
      %22 = sbr.rel (0) target = $region13
    $region12: #{tpu_custom_call.1} parent=1 // pred_region
      %23 = dma.done [#allocation3], 256
    $region13: #{tpu_custom_call.1} parent=1 // pred_fallthru
      _
    %s24 = smul.u32 0, 8
    %s25 = scalar_lea.vmem %s1, %s24
    %v26 = vld [vmem:[%s25] sm:$0xff]
    %v27 = vld [vmem:[#allocation2] sm:$0xff]
    %v28 = vld [vmem:[#allocation2 + $0x8] sm:$0xff]
    %30 = vset.pattern.permute.xlu0 0
    %31 = vperm.xlu0 %30, %v26
    %v32 = vpop.permute.xlu0 %31
    %v34 = vsub.f32 %v27, %v32
    %v35 = vsub.f32 %v28, %v32
    %v36 = vmax.f32 %v34, 0.0
    %v37 = vmax.f32 %v35, 0.0
    %38 = vst [vmem:[#allocation5] sm:$0xff] %v36
    %39 = vst [vmem:[#allocation5 + $0x8] sm:$0xff] %v37
    // Predicated region
    $region14: #{tpu_custom_call.1} parent=1 // pred_check
      _
    $region15: #{tpu_custom_call.1} parent=1 // pred_check_branch
      %41 = sbr.rel (0) target = $region17
    $region16: #{tpu_custom_call.1} parent=1 // pred_region
      %s43 = ssub.s32 256, 256
      %44 = vsyncadd [#allocation4], %s43
      %s46 = sshll.u32 [#allocation5], 4
      %s47 = int_to_ptr.vmem [resolvable:$true] %s46
      %49 = dma.vmem_to_hbm [thread:$0]  %s47, 256, %s2, [#allocation4]
    $region17: #{tpu_custom_call.1} parent=1 // pred_fallthru
      _
    // Predicated region
    $region18: #{tpu_custom_call.1} parent=1 // pred_check
      _
    $region19: #{tpu_custom_call.1} parent=1 // pred_check_branch
      %51 = sbr.rel (0) target = $region21
    $region20: #{tpu_custom_call.1} parent=1 // pred_region
      %52 = dma.done [#allocation4], 256
    $region21: #{tpu_custom_call.1} parent=1 // pred_fallthru
      _
    %53 = vsyncpa [#allocation3], 1
    %54 = vsyncpa [#allocation4], 1

</llo_original>
